<compile_context>
chip_gen: v7x
topology: tpu7x:2x2x1
jax: 0.10.0
libtpu: 0.0.40
codegen_flags: <defaults>
</compile_context>

<pallas_src>
import jax
import jax.numpy as jnp
from jax.experimental import pallas as pl
from jax.experimental.pallas import tpu as pltpu

NUM_FEATURES = 470
NUM_CLASSES = 5
H1 = 256
H2 = 128
CP = 128           # classes padded to one lane-dense (..., 128) block


def _num_tensorcores():
    """2 for chips exposing two TensorCores per device (v4/v5p megacore, v7x),
    else 1.  Used only to choose the number of batch tiles (grid size)."""
    try:
        kind = jax.devices()[0].device_kind.lower()
    except Exception:
        return 1
    if "v4" in kind or "v5p" in kind or "7" in kind:
        return 2
    return 1


def attention_classifier_kernel(x_ref, w1_ref, b1_ref, w2_ref, b2_ref,
                                w3_ref, b3_ref, out_ref):
    # x arrives unpadded f32; cast to bf16 in-kernel (VPU filler hidden under
    # DMA/MXU).  bf16 MXU operands, f32 accumulation; elementwise ops in f32.
    x = x_ref[...].astype(jnp.bfloat16)                                     # (tb, 470)
    h1 = jnp.dot(x, w1_ref[...], preferred_element_type=jnp.float32) + b1_ref[...]
    h1 = jnp.maximum(h1, 0.0)                                               # (tb, 256) f32
    h2 = jnp.dot(h1.astype(jnp.bfloat16), w2_ref[...],
                 preferred_element_type=jnp.float32) + b2_ref[...]
    h2 = jnp.maximum(h2, 0.0)                                               # (tb, 128) f32

    # softmax over a size-1 dim is identically 1.0 -> the attention weighting
    # is a no-op; Wa/ba never touch the output and are never DMA'd.
    out_ref[...] = jnp.dot(h2.astype(jnp.bfloat16), w3_ref[...],
                           preferred_element_type=jnp.float32) + b3_ref[...]  # (tb, 128)


def prepare_params(params):
    """One-time weight preparation (bf16 cast + lane padding of the classifier
    head).  Call once and reuse: keeps the per-call path free of pad/cast
    launches and redundant HBM writes."""
    w1, b1, w2, b2, wa, ba, w3, b3 = params      # wa/ba never affect the output
    w1b = w1.astype(jnp.bfloat16)                                          # (470, 256)
    w2b = w2.astype(jnp.bfloat16)                                          # (256, 128)
    w3p = jnp.zeros((H2, CP), jnp.bfloat16).at[:, :NUM_CLASSES].set(
        w3.astype(jnp.bfloat16))                                           # (128, 128)
    b3p = jnp.zeros((1, CP), jnp.float32).at[:, :NUM_CLASSES].set(b3)      # (1, 128)
    return (w1b, b1, w2b, b2, w3p, b3p)


def attention_classifier(x, prepared, *, num_tiles=None):
    """Returns (logits (B, NUM_CLASSES) f32, attention_weights (B, 1) f32)."""
    B, F = x.shape
    assert F == NUM_FEATURES
    w1b, b1, w2b, b2, w3p, b3p = prepared

    # One batch tile per TensorCore.  Per-tile compute is ~0.1 us vs ~0.35 us
    # per-step overhead, so never use more tiles than cores.  Fall back to a
    # single full-batch tile when B does not split into 8-row-aligned halves
    # (block shape == full array dims is always legal, so no padding needed).
    if num_tiles is None:
        num_tiles = _num_tensorcores()
    if num_tiles > 1 and (B % num_tiles != 0 or (B // num_tiles) % 8 != 0):
        num_tiles = 1
    tb = B // num_tiles

    rep = lambda i: (0, 0)   # constant index_map -> weights fetched once and
                             # kept resident in VMEM across batch tiles (<0.4 MB)

    flops = 2 * B * (F * H1 + H1 * H2 + H2 * CP)
    bytes_accessed = (x.size * 4 + w1b.size * 2 + w2b.size * 2 + w3p.size * 2
                      + b1.size * 4 + b2.size * 4 + b3p.size * 4 + B * CP * 4)

    out_p = pl.pallas_call(
        attention_classifier_kernel,
        out_shape=jax.ShapeDtypeStruct((B, CP), jnp.float32),
        grid=(num_tiles,),
        in_specs=[
            pl.BlockSpec((tb, F), lambda i: (i, 0)),   # x: unpadded, f32
            pl.BlockSpec((F, H1), rep),
            pl.BlockSpec((1, H1), rep),
            pl.BlockSpec((H1, H2), rep),
            pl.BlockSpec((1, H2), rep),
            pl.BlockSpec((H2, CP), rep),
            pl.BlockSpec((1, CP), rep),
        ],
        out_specs=pl.BlockSpec((tb, CP), lambda i: (i, 0)),
        compiler_params=pltpu.CompilerParams(
            dimension_semantics=("parallel",)),
        cost_estimate=pl.CostEstimate(
            flops=flops, transcendentals=0, bytes_accessed=bytes_accessed),
    )(x, w1b, b1, w2b, b2, w3p, b3p)

    # softmax over a size-1 dim == 1.0 exactly -> attention weights are a
    # compile-time constant; producing them in the kernel would add a whole
    # lane-width-1 output pipeline for nothing.
    attn = jnp.ones((B, 1), jnp.float32)
    # Consumers able to take the padded (B, 128) block can skip this slice.
    return out_p[:, :NUM_CLASSES], attn


def init_params(key):
    """Deterministic PyTorch-Linear-style init (uniform +-1/sqrt(fan_in)),
    weights stored pre-transposed as (in_features, out_features)."""
    ks = jax.random.split(key, 8)

    def lin(kw, kb, fan_in, fan_out):
        bound = 1.0 / jnp.sqrt(fan_in)
        w = jax.random.uniform(kw, (fan_in, fan_out), jnp.float32, -bound, bound)
        b = jax.random.uniform(kb, (1, fan_out), jnp.float32, -bound, bound)
        return w, b

    w1, b1 = lin(ks[0], ks[1], NUM_FEATURES, H1)
    w2, b2 = lin(ks[2], ks[3], H1, H2)
    wa, ba = lin(ks[4], ks[5], H2, 1)
    w3, b3 = lin(ks[6], ks[7], H2, NUM_CLASSES)
    return (w1, b1, w2, b2, wa, ba, w3, b3)


def reference_forward(x, params):
    """Pure-JAX reference mirroring the PyTorch forward with the same bf16
    matmul operands / f32 accumulation the kernel uses."""
    w1, b1, w2, b2, wa, ba, w3, b3 = params
    xb = x.astype(jnp.bfloat16)
    h1 = jnp.maximum(jnp.dot(xb, w1.astype(jnp.bfloat16),
                             preferred_element_type=jnp.float32) + b1, 0.0)
    h2 = jnp.maximum(jnp.dot(h1.astype(jnp.bfloat16), w2.astype(jnp.bfloat16),
                             preferred_element_type=jnp.float32) + b2, 0.0)
    logits = h2 @ wa + ba
    w = jax.nn.softmax(logits, axis=1)                 # size-1 dim -> exactly 1.0
    out = jnp.dot((h2 * w).astype(jnp.bfloat16), w3.astype(jnp.bfloat16),
                  preferred_element_type=jnp.float32) + b3
    return out, w


if __name__ == "__main__":
    key = jax.random.PRNGKey(0)
    kx, kp = jax.random.split(key)

    B = 64                         # small batch; splits into 2 tiles on v7x
    x = jax.random.normal(kx, (B, NUM_FEATURES), jnp.float32)
    params = init_params(kp)

    prepared = prepare_params(params)          # one-time weight prep (cached)
    fwd = jax.jit(lambda xx: attention_classifier(xx, prepared))

    out, attn = fwd(x)
    out = jax.block_until_ready(out)
    attn = jax.block_until_ready(attn)

    ref_out, ref_attn = reference_forward(x, params)
    assert out.shape == (B, NUM_CLASSES) and attn.shape == (B, 1)
    assert jnp.allclose(out, ref_out, atol=5e-3, rtol=5e-3)
    assert jnp.allclose(attn, ref_attn, atol=1e-6, rtol=1e-6)
    assert jnp.all(attn == 1.0)

    print("KERNEL_OK")
</pallas_src>

<mosaic_0001>
module attributes {stable_mosaic.version = 11 : i64} {
  func.func @attention_classifier_kernel(%arg0: i32, %arg1: memref<64x470xf32, #tpu.memory_space<vmem>>, %arg2: memref<470x256xbf16, #tpu.memory_space<vmem>>, %arg3: memref<1x256xf32, #tpu.memory_space<vmem>>, %arg4: memref<256x128xbf16, #tpu.memory_space<vmem>>, %arg5: memref<1x128xf32, #tpu.memory_space<vmem>>, %arg6: memref<128x128xbf16, #tpu.memory_space<vmem>>, %arg7: memref<1x128xf32, #tpu.memory_space<vmem>>, %arg8: memref<64x128xf32, #tpu.memory_space<vmem>>) attributes {dimension_semantics = [#tpu.dimension_semantics<parallel>], iteration_bounds = array<i64: 1>, scalar_prefetch = 0 : i64, scratch_operands = 0 : i64, tpu.core_type = #tpu.core_type<tc>, window_params = [{transform_indices = @transform_0, window_bounds = array<i64: 64, 470>}, {pipeline_mode = #tpu.pipeline_mode<synchronous>, transform_indices = @transform_1, window_bounds = array<i64: 470, 256>}, {pipeline_mode = #tpu.pipeline_mode<synchronous>, transform_indices = @transform_2, window_bounds = array<i64: 1, 256>}, {pipeline_mode = #tpu.pipeline_mode<synchronous>, transform_indices = @transform_3, window_bounds = array<i64: 256, 128>}, {pipeline_mode = #tpu.pipeline_mode<synchronous>, transform_indices = @transform_4, window_bounds = array<i64: 1, 128>}, {pipeline_mode = #tpu.pipeline_mode<synchronous>, transform_indices = @transform_5, window_bounds = array<i64: 128, 128>}, {pipeline_mode = #tpu.pipeline_mode<synchronous>, transform_indices = @transform_6, window_bounds = array<i64: 1, 128>}, {transform_indices = @transform_7, window_bounds = array<i64: 64, 128>}]} {
    %c0 = arith.constant 0 : index
    %c0_0 = arith.constant 0 : index
    %0 = vector.load %arg1[%c0, %c0_0] : memref<64x470xf32, #tpu.memory_space<vmem>>, vector<64x470xf32>
    %1 = arith.truncf %0 : vector<64x470xf32> to vector<64x470xbf16>
    %c0_1 = arith.constant 0 : index
    %c0_2 = arith.constant 0 : index
    %2 = vector.load %arg2[%c0_1, %c0_2] : memref<470x256xbf16, #tpu.memory_space<vmem>>, vector<470x256xbf16>
    %cst = arith.constant dense<0.000000e+00> : vector<64x256xf32>
    %3 = tpu.matmul %1, %2, %cst {dimension_numbers = #tpu.dot_dimension_numbers<[1], [0], [0], [1], [0, 0, 1, 1], [], []>} : vector<64x470xbf16>, vector<470x256xbf16>, vector<64x256xf32> -> vector<64x256xf32>
    %c0_3 = arith.constant 0 : index
    %c0_4 = arith.constant 0 : index
    %4 = vector.load %arg3[%c0_3, %c0_4] : memref<1x256xf32, #tpu.memory_space<vmem>>, vector<1x256xf32>
    %5 = vector.broadcast %4 : vector<1x256xf32> to vector<64x256xf32>
    %6 = arith.addf %3, %5 : vector<64x256xf32>
    %cst_5 = arith.constant 0.000000e+00 : f32
    %7 = vector.broadcast %cst_5 : f32 to vector<64x256xf32>
    %8 = arith.maximumf %6, %7 : vector<64x256xf32>
    %9 = arith.truncf %8 : vector<64x256xf32> to vector<64x256xbf16>
    %c0_6 = arith.constant 0 : index
    %c0_7 = arith.constant 0 : index
    %10 = vector.load %arg4[%c0_6, %c0_7] : memref<256x128xbf16, #tpu.memory_space<vmem>>, vector<256x128xbf16>
    %cst_8 = arith.constant dense<0.000000e+00> : vector<64x128xf32>
    %11 = tpu.matmul %9, %10, %cst_8 {dimension_numbers = #tpu.dot_dimension_numbers<[1], [0], [0], [1], [0, 0, 1, 1], [], []>} : vector<64x256xbf16>, vector<256x128xbf16>, vector<64x128xf32> -> vector<64x128xf32>
    %c0_9 = arith.constant 0 : index
    %c0_10 = arith.constant 0 : index
    %12 = vector.load %arg5[%c0_9, %c0_10] : memref<1x128xf32, #tpu.memory_space<vmem>>, vector<1x128xf32>
    %13 = vector.broadcast %12 : vector<1x128xf32> to vector<64x128xf32>
    %14 = arith.addf %11, %13 : vector<64x128xf32>
    %cst_11 = arith.constant 0.000000e+00 : f32
    %15 = vector.broadcast %cst_11 : f32 to vector<64x128xf32>
    %16 = arith.maximumf %14, %15 : vector<64x128xf32>
    %17 = arith.truncf %16 : vector<64x128xf32> to vector<64x128xbf16>
    %c0_12 = arith.constant 0 : index
    %c0_13 = arith.constant 0 : index
    %18 = vector.load %arg6[%c0_12, %c0_13] : memref<128x128xbf16, #tpu.memory_space<vmem>>, vector<128x128xbf16>
    %cst_14 = arith.constant dense<0.000000e+00> : vector<64x128xf32>
    %19 = tpu.matmul %17, %18, %cst_14 {dimension_numbers = #tpu.dot_dimension_numbers<[1], [0], [0], [1], [0, 0, 1, 1], [], []>} : vector<64x128xbf16>, vector<128x128xbf16>, vector<64x128xf32> -> vector<64x128xf32>
    %c0_15 = arith.constant 0 : index
    %c0_16 = arith.constant 0 : index
    %20 = vector.load %arg7[%c0_15, %c0_16] : memref<1x128xf32, #tpu.memory_space<vmem>>, vector<1x128xf32>
    %21 = vector.broadcast %20 : vector<1x128xf32> to vector<64x128xf32>
    %22 = arith.addf %19, %21 : vector<64x128xf32>
    %c0_17 = arith.constant 0 : index
    %c0_18 = arith.constant 0 : index
    %23 = vector.load %arg8[%c0_17, %c0_18] : memref<64x128xf32, #tpu.memory_space<vmem>>, vector<64x128xf32>
    tpu.vector_store %arg8[%c0_17, %c0_18], %22 {strides = array<i32>} : memref<64x128xf32, #tpu.memory_space<vmem>>, vector<64x128xf32>,
    return
  }
  func.func @transform_0(%arg0: i32) -> (i32, i32) {
    %c0_i32 = arith.constant 0 : i32
    %c0_i32_0 = arith.constant 0 : i32
    return %arg0, %c0_i32 : i32, i32
  }
  func.func @transform_1(%arg0: i32) -> (i32, i32) {
    %c0_i32 = arith.constant 0 : i32
    %c0_i32_0 = arith.constant 0 : i32
    %c0_i32_1 = arith.constant 0 : i32
    return %c0_i32, %c0_i32_0 : i32, i32
  }
  func.func @transform_2(%arg0: i32) -> (i32, i32) {
    %c0_i32 = arith.constant 0 : i32
    %c0_i32_0 = arith.constant 0 : i32
    %c0_i32_1 = arith.constant 0 : i32
    return %c0_i32, %c0_i32_0 : i32, i32
  }
  func.func @transform_3(%arg0: i32) -> (i32, i32) {
    %c0_i32 = arith.constant 0 : i32
    %c0_i32_0 = arith.constant 0 : i32
    %c0_i32_1 = arith.constant 0 : i32
    return %c0_i32, %c0_i32_0 : i32, i32
  }
  func.func @transform_4(%arg0: i32) -> (i32, i32) {
    %c0_i32 = arith.constant 0 : i32
    %c0_i32_0 = arith.constant 0 : i32
    %c0_i32_1 = arith.constant 0 : i32
    return %c0_i32, %c0_i32_0 : i32, i32
  }
  func.func @transform_5(%arg0: i32) -> (i32, i32) {
    %c0_i32 = arith.constant 0 : i32
    %c0_i32_0 = arith.constant 0 : i32
    %c0_i32_1 = arith.constant 0 : i32
    return %c0_i32, %c0_i32_0 : i32, i32
  }
  func.func @transform_6(%arg0: i32) -> (i32, i32) {
    %c0_i32 = arith.constant 0 : i32
    %c0_i32_0 = arith.constant 0 : i32
    %c0_i32_1 = arith.constant 0 : i32
    return %c0_i32, %c0_i32_0 : i32, i32
  }
  func.func @transform_7(%arg0: i32) -> (i32, i32) {
    %c0_i32 = arith.constant 0 : i32
    %c0_i32_0 = arith.constant 0 : i32
    return %arg0, %c0_i32 : i32, i32
  }
}

</mosaic_0001>

<llo_original>
// kernel: _lambda_.1
$region0: #{_lambda_.1}
  #allocation0 [shape = 'u32[]', space=smem, size = 0x4, offset = 0x4, fixed_abs, tag = 'smem constant byte address 0x4 - core index']
  #allocation1 [shape = 'u32[144,128]{1,0:T(1,128)}', space=vmem, size = 0x12000, scoped, tag = 'internal scratch']
  %s0 = inlined_call_operand.hbm [shape: f32[64,470], index: 0, kind: input, shape index: {}]
  %s1 = inlined_call_operand.hbm [shape: bf16[470,256], index: 1, kind: input, shape index: {}]
  %s2 = inlined_call_operand.vmem [shape: f32[1,256], index: 2, kind: input, shape index: {}]
  %s3 = inlined_call_operand.hbm [shape: bf16[256,128], index: 3, kind: input, shape index: {}]
  %s4 = inlined_call_operand.vmem [shape: f32[1,128], index: 4, kind: input, shape index: {}]
  %s5 = inlined_call_operand.hbm [shape: bf16[128,128], index: 5, kind: input, shape index: {}]
  %s6 = inlined_call_operand.vmem [shape: f32[1,128], index: 6, kind: input, shape index: {}]
  %s7 = inlined_call_operand.vmem [shape: f32[64,128], index: 7, kind: output, shape index: {}]
  %s8 = sld [smem:[#allocation0]]
  $region54: #{_lambda_.1} parent=0
    _
  %s10 = ssub.s32 1, %s8
  %s11 = scalar_select 0, %s10, %s8
  $region1: #{_lambda_.1} parent=0
    #allocation2 [shape = 'u8[131072]{0}', space=vmem, size = 0x20000, scoped, tag = 'input window, operand 0, single buffered']
    #allocation3 [shape = 's32[1]{0}', space=sflag, size = 0x4, scoped, tag = 'scoped memory for _lambda_.1']
    #allocation4 [shape = 'u8[241664]{0}', space=vmem, size = 0x3b000, scoped, tag = 'input window, operand 1, single buffered']
    #allocation5 [shape = 's32[1]{0}', space=sflag, size = 0x4, scoped, tag = 'scoped memory for _lambda_.1']
    #allocation6 [shape = 'u8[65536]{0}', space=vmem, size = 0x10000, scoped, tag = 'input window, operand 3, single buffered']
    #allocation7 [shape = 'u8[32768]{0}', space=vmem, size = 0x8000, scoped, tag = 'input window, operand 5, single buffered']
    #allocation8 [shape = 's32[1]{0}', space=sflag, size = 0x4, scoped, tag = 'scoped memory for _lambda_.1']
    %12 = vsyncpa [#allocation3], 0
    %13 = vsyncpa [#allocation5], 0
    %14 = vsyncpa [#allocation8], 0
    // Predicated region
    $region2: #{_lambda_.1} parent=1 // pred_check
      _
    $region3: #{_lambda_.1} parent=1 // pred_check_branch
      %16 = sbr.rel (0) target = $region5
    $region4: #{_lambda_.1} parent=1 // pred_region
      %s18 = ssub.s32 4096, 4096
      %19 = vsyncadd [#allocation3], %s18
      %s20 = sshll.u32 [#allocation2], 4
      %s21 = int_to_ptr.vmem [resolvable:$true] %s20
      %26 = dma.hbm_to_vmem [thread:$0]  %s0, 4096, %s21, [#allocation3], 512, 512, 32
    $region5: #{_lambda_.1} parent=1 // pred_fallthru
      _
    // Predicated region
    $region6: #{_lambda_.1} parent=1 // pred_check
      _
    $region7: #{_lambda_.1} parent=1 // pred_check_branch
      %28 = sbr.rel (0) target = $region9
    $region8: #{_lambda_.1} parent=1 // pred_region
      %s30 = ssub.s32 7552, 7552
      %31 = vsyncadd [#allocation5], %s30
      %s32 = sshll.u32 [#allocation4], 4
      %s33 = int_to_ptr.vmem [resolvable:$true] %s32
      %38 = dma.hbm_to_vmem [thread:$0]  %s1, 7552, %s33, [#allocation5], 128, 128, 8
    $region9: #{_lambda_.1} parent=1 // pred_fallthru
      _
    // Predicated region
    $region10: #{_lambda_.1} parent=1 // pred_check
      _
    $region11: #{_lambda_.1} parent=1 // pred_check_branch
      %40 = sbr.rel (0) target = $region13
    $region12: #{_lambda_.1} parent=1 // pred_region
      _
    $region13: #{_lambda_.1} parent=1 // pred_fallthru
      _
    // Predicated region
    $region14: #{_lambda_.1} parent=1 // pred_check
      _
    $region15: #{_lambda_.1} parent=1 // pred_check_branch
      %42 = sbr.rel (0) target = $region17
    $region16: #{_lambda_.1} parent=1 // pred_region
      %s44 = ssub.s32 2048, 2048
      %45 = vsyncadd [#allocation5], %s44
      %s46 = sshll.u32 [#allocation6], 4
      %s47 = int_to_ptr.vmem [resolvable:$true] %s46
      %52 = dma.hbm_to_vmem [thread:$0]  %s3, 2048, %s47, [#allocation5], 64, 64, 4
    $region17: #{_lambda_.1} parent=1 // pred_fallthru
      _
    // Predicated region
    $region18: #{_lambda_.1} parent=1 // pred_check
      _
    $region19: #{_lambda_.1} parent=1 // pred_check_branch
      %54 = sbr.rel (0) target = $region21
    $region20: #{_lambda_.1} parent=1 // pred_region
      _
    $region21: #{_lambda_.1} parent=1 // pred_fallthru
      _
    // Predicated region
    $region22: #{_lambda_.1} parent=1 // pred_check
      _
    $region23: #{_lambda_.1} parent=1 // pred_check_branch
      %56 = sbr.rel (0) target = $region25
    $region24: #{_lambda_.1} parent=1 // pred_region
      %s58 = ssub.s32 1024, 1024
      %59 = vsyncadd [#allocation8], %s58
      %s60 = sshll.u32 [#allocation7], 4
      %s61 = int_to_ptr.vmem [resolvable:$true] %s60
      %66 = dma.hbm_to_vmem [thread:$0]  %s5, 1024, %s61, [#allocation8], 64, 64, 4
    $region25: #{_lambda_.1} parent=1 // pred_fallthru
      _
    // Predicated region
    $region26: #{_lambda_.1} parent=1 // pred_check
      _
    $region27: #{_lambda_.1} parent=1 // pred_check_branch
      %68 = sbr.rel (0) target = $region29
    $region28: #{_lambda_.1} parent=1 // pred_region
      _
    $region29: #{_lambda_.1} parent=1 // pred_fallthru
      _
    // Predicated region
    $region30: #{_lambda_.1} parent=1 // pred_check
      _
    $region31: #{_lambda_.1} parent=1 // pred_check_branch
      %70 = sbr.rel (0) target = $region33
    $region32: #{_lambda_.1} parent=1 // pred_region
      %71 = dma.done [#allocation3], 4096
    $region33: #{_lambda_.1} parent=1 // pred_fallthru
      _
    // Predicated region
    $region34: #{_lambda_.1} parent=1 // pred_check
      _
    $region35: #{_lambda_.1} parent=1 // pred_check_branch
      %73 = sbr.rel (0) target = $region37
    $region36: #{_lambda_.1} parent=1 // pred_region
      %74 = dma.done [#allocation5], 7552
    $region37: #{_lambda_.1} parent=1 // pred_fallthru
      _
    // Predicated region
    $region38: #{_lambda_.1} parent=1 // pred_check
      _
    $region39: #{_lambda_.1} parent=1 // pred_check_branch
      %76 = sbr.rel (0) target = $region41
    $region40: #{_lambda_.1} parent=1 // pred_region
      %77 = dma.done [#allocation5], 2048
    $region41: #{_lambda_.1} parent=1 // pred_fallthru
      _
    // Predicated region
    $region42: #{_lambda_.1} parent=1 // pred_check
      _
    $region43: #{_lambda_.1} parent=1 // pred_check_branch
      %79 = sbr.rel (0) target = $region45
    $region44: #{_lambda_.1} parent=1 // pred_region
      %80 = dma.done [#allocation8], 1024
    $region45: #{_lambda_.1} parent=1 // pred_fallthru
      _
    %v82 = vld [vmem:[#allocation2] sm:$0xff]
    %v83 = vld [vmem:[#allocation2 + $0x8] sm:$0xff]
    %v84 = vld [vmem:[#allocation2 + $0x10] sm:$0xff]
    %v85 = vld [vmem:[#allocation2 + $0x18] sm:$0xff]
    %v86 = vld [vmem:[#allocation2 + $0x20] sm:$0xff]
    %v87 = vld [vmem:[#allocation2 + $0x28] sm:$0xff]
    %v88 = vld [vmem:[#allocation2 + $0x30] sm:$0xff]
    %v89 = vld [vmem:[#allocation2 + $0x38] sm:$0xff]
    %v90 = vld [vmem:[#allocation2 + $0x40] sm:$0xff]
    %v91 = vld [vmem:[#allocation2 + $0x48] sm:$0xff]
    %v92 = vld [vmem:[#allocation2 + $0x50] sm:$0xff]
    %v93 = vld [vmem:[#allocation2 + $0x58] sm:$0xff]
    %v94 = vld [vmem:[#allocation2 + $0x60] sm:$0xff]
    %v95 = vld [vmem:[#allocation2 + $0x68] sm:$0xff]
    %v96 = vld [vmem:[#allocation2 + $0x70] sm:$0xff]
    %v97 = vld [vmem:[#allocation2 + $0x78] sm:$0xff]
    %v98 = vld [vmem:[#allocation2 + $0x80] sm:$0xff]
    %v99 = vld [vmem:[#allocation2 + $0x88] sm:$0xff]
    %v100 = vld [vmem:[#allocation2 + $0x90] sm:$0xff]
    %v101 = vld [vmem:[#allocation2 + $0x98] sm:$0xff]
    %v102 = vld [vmem:[#allocation2 + $0xa0] sm:$0xff]
    %v103 = vld [vmem:[#allocation2 + $0xa8] sm:$0xff]
    %v104 = vld [vmem:[#allocation2 + $0xb0] sm:$0xff]
    %v105 = vld [vmem:[#allocation2 + $0xb8] sm:$0xff]
    %v106 = vld [vmem:[#allocation2 + $0xc0] sm:$0xff]
    %v107 = vld [vmem:[#allocation2 + $0xc8] sm:$0xff]
    %v108 = vld [vmem:[#allocation2 + $0xd0] sm:$0xff]
    %v109 = vld [vmem:[#allocation2 + $0xd8] sm:$0xff]
    %v110 = vld [vmem:[#allocation2 + $0xe0] sm:$0xff]
    %v111 = vld [vmem:[#allocation2 + $0xe8] sm:$0xff]
    %v112 = vld [vmem:[#allocation2 + $0xf0] sm:$0xff]
    %v113 = vld [vmem:[#allocation2 + $0xf8] sm:$0xff]
    %v114 = vpack.c.bf16 %v86, %v82
    %v115 = vpack.c.bf16 %v87, %v83
    %v116 = vpack.c.bf16 %v88, %v84
    %v117 = vpack.c.bf16 %v89, %v85
    %v118 = vpack.c.bf16 %v94, %v90
    %v119 = vpack.c.bf16 %v95, %v91
    %v120 = vpack.c.bf16 %v96, %v92
    %v121 = vpack.c.bf16 %v97, %v93
    %v122 = vpack.c.bf16 %v102, %v98
    %v123 = vpack.c.bf16 %v103, %v99
    %v124 = vpack.c.bf16 %v104, %v100
    %v125 = vpack.c.bf16 %v105, %v101
    %v126 = vpack.c.bf16 %v110, %v106
    %v127 = vpack.c.bf16 %v111, %v107
    %v128 = vpack.c.bf16 %v112, %v108
    %v129 = vpack.c.bf16 %v113, %v109
    %v130 = vld [vmem:[#allocation4] sm:$0xff]
    %v131 = vld [vmem:[#allocation4 + $0x8] sm:$0xff]
    %v132 = vld [vmem:[#allocation4 + $0x10] sm:$0xff]
    %v133 = vld [vmem:[#allocation4 + $0x18] sm:$0xff]
    %v134 = vld [vmem:[#allocation4 + $0x20] sm:$0xff]
    %v135 = vld [vmem:[#allocation4 + $0x28] sm:$0xff]
    %v136 = vld [vmem:[#allocation4 + $0x30] sm:$0xff]
    %v137 = vld [vmem:[#allocation4 + $0x38] sm:$0xff]
    %v138 = vld [vmem:[#allocation4 + $0x40] sm:$0xff]
    %v139 = vld [vmem:[#allocation4 + $0x48] sm:$0xff]
    %v140 = vld [vmem:[#allocation4 + $0x50] sm:$0xff]
    %v141 = vld [vmem:[#allocation4 + $0x58] sm:$0xff]
    %v142 = vld [vmem:[#allocation4 + $0x60] sm:$0xff]
    %v143 = vld [vmem:[#allocation4 + $0x68] sm:$0xff]
    %v144 = vld [vmem:[#allocation4 + $0x70] sm:$0xff]
    %v145 = vld [vmem:[#allocation4 + $0x78] sm:$0xff]
    %v146 = vld [vmem:[#allocation4 + $0x80] sm:$0xff]
    %v147 = vld [vmem:[#allocation4 + $0x88] sm:$0xff]
    %v148 = vld [vmem:[#allocation4 + $0x90] sm:$0xff]
    %v149 = vld [vmem:[#allocation4 + $0x98] sm:$0xff]
    %v150 = vld [vmem:[#allocation4 + $0xa0] sm:$0xff]
    %v151 = vld [vmem:[#allocation4 + $0xa8] sm:$0xff]
    %v152 = vld [vmem:[#allocation4 + $0xb0] sm:$0xff]
    %v153 = vld [vmem:[#allocation4 + $0xb8] sm:$0xff]
    %v154 = vld [vmem:[#allocation4 + $0xc0] sm:$0xff]
    %v155 = vld [vmem:[#allocation4 + $0xc8] sm:$0xff]
    %v156 = vld [vmem:[#allocation4 + $0xd0] sm:$0xff]
    %v157 = vld [vmem:[#allocation4 + $0xd8] sm:$0xff]
    %v158 = vld [vmem:[#allocation4 + $0xe0] sm:$0xff]
    %v159 = vld [vmem:[#allocation4 + $0xe8] sm:$0xff]
    %v160 = vld [vmem:[#allocation4 + $0xf0] sm:$0xff]
    %v161 = vld [vmem:[#allocation4 + $0xf8] sm:$0xff]
    %v162 = vld [vmem:[#allocation4 + $0x100] sm:$0xff]
    %v163 = vld [vmem:[#allocation4 + $0x108] sm:$0xff]
    %v164 = vld [vmem:[#allocation4 + $0x110] sm:$0xff]
    %v165 = vld [vmem:[#allocation4 + $0x118] sm:$0xff]
    %v166 = vld [vmem:[#allocation4 + $0x120] sm:$0xff]
    %v167 = vld [vmem:[#allocation4 + $0x128] sm:$0xff]
    %v168 = vld [vmem:[#allocation4 + $0x130] sm:$0xff]
    %v169 = vld [vmem:[#allocation4 + $0x138] sm:$0xff]
    %v170 = vld [vmem:[#allocation4 + $0x140] sm:$0xff]
    %v171 = vld [vmem:[#allocation4 + $0x148] sm:$0xff]
    %v172 = vld [vmem:[#allocation4 + $0x150] sm:$0xff]
    %v173 = vld [vmem:[#allocation4 + $0x158] sm:$0xff]
    %v174 = vld [vmem:[#allocation4 + $0x160] sm:$0xff]
    %v175 = vld [vmem:[#allocation4 + $0x168] sm:$0xff]
    %v176 = vld [vmem:[#allocation4 + $0x170] sm:$0xff]
    %v177 = vld [vmem:[#allocation4 + $0x178] sm:$0xff]
    %v178 = vld [vmem:[#allocation4 + $0x180] sm:$0xff]
    %v179 = vld [vmem:[#allocation4 + $0x188] sm:$0xff]
    %v180 = vld [vmem:[#allocation4 + $0x190] sm:$0xff]
    %v181 = vld [vmem:[#allocation4 + $0x198] sm:$0xff]
    %v182 = vld [vmem:[#allocation4 + $0x1a0] sm:$0xff]
    %v183 = vld [vmem:[#allocation4 + $0x1a8] sm:$0xff]
    %v184 = vld [vmem:[#allocation4 + $0x1b0] sm:$0xff]
    %v185 = vld [vmem:[#allocation4 + $0x1b8] sm:$0xff]
    %v186 = vld [vmem:[#allocation4 + $0x1c0] sm:$0xff]
    %v187 = vld [vmem:[#allocation4 + $0x1c8] sm:$0xff]
    %v188 = vld [vmem:[#allocation4 + $0x1d0] sm:$0x77]
    %v189 = vld [vmem:[%s2] sm:$0x3]
    %v191 = vlaneseq
    %v192 = vshrl.u32 %v191, 7
    %v193 = vsub.s32 0, %v192
    %v194 = vrot.slane %v189, %v193
    %v195 = vlaneseq
    %v196 = vshrl.u32 %v195, 7
    %v197 = vsub.s32 1, %v196
    %v198 = vrot.slane %v189, %v197
    %v260 = vunpack.c.l.b16 %v130
    %v261 = vunpack.c.h.b16 %v130
    %v262 = vunpack.c.l.b16 %v131
    %v263 = vunpack.c.h.b16 %v131
    %v264 = vunpack.c.l.b16 %v132
    %v265 = vunpack.c.h.b16 %v132
    %v266 = vunpack.c.l.b16 %v133
    %v267 = vunpack.c.h.b16 %v133
    %v268 = vunpack.c.l.b16 %v134
    %v269 = vunpack.c.h.b16 %v134
    %v270 = vunpack.c.l.b16 %v135
    %v271 = vunpack.c.h.b16 %v135
    %v272 = vunpack.c.l.b16 %v136
    %v273 = vunpack.c.h.b16 %v136
    %v274 = vunpack.c.l.b16 %v137
    %v275 = vunpack.c.h.b16 %v137
    %v276 = vunpack.c.l.b16 %v138
    %v277 = vunpack.c.h.b16 %v138
    %v278 = vunpack.c.l.b16 %v139
    %v279 = vunpack.c.h.b16 %v139
    %v280 = vunpack.c.l.b16 %v140
    %v281 = vunpack.c.h.b16 %v140
    %v282 = vunpack.c.l.b16 %v141
    %v283 = vunpack.c.h.b16 %v141
    %v284 = vunpack.c.l.b16 %v142
    %v285 = vunpack.c.h.b16 %v142
    %v286 = vunpack.c.l.b16 %v143
    %v287 = vunpack.c.h.b16 %v143
    %v288 = vunpack.c.l.b16 %v144
    %v289 = vunpack.c.h.b16 %v144
    %v290 = vunpack.c.l.b16 %v145
    %v291 = vunpack.c.h.b16 %v145
    %v292 = vunpack.c.l.b16 %v146
    %v293 = vunpack.c.h.b16 %v146
    %v294 = vunpack.c.l.b16 %v147
    %v295 = vunpack.c.h.b16 %v147
    %v296 = vunpack.c.l.b16 %v148
    %v297 = vunpack.c.h.b16 %v148
    %v298 = vunpack.c.l.b16 %v149
    %v299 = vunpack.c.h.b16 %v149
    %v300 = vunpack.c.l.b16 %v150
    %v301 = vunpack.c.h.b16 %v150
    %v302 = vunpack.c.l.b16 %v151
    %v303 = vunpack.c.h.b16 %v151
    %v304 = vunpack.c.l.b16 %v152
    %v305 = vunpack.c.h.b16 %v152
    %v306 = vunpack.c.l.b16 %v153
    %v307 = vunpack.c.h.b16 %v153
    %v308 = vunpack.c.l.b16 %v154
    %v309 = vunpack.c.h.b16 %v154
    %v310 = vunpack.c.l.b16 %v155
    %v311 = vunpack.c.h.b16 %v155
    %v312 = vunpack.c.l.b16 %v156
    %v313 = vunpack.c.h.b16 %v156
    %v314 = vunpack.c.l.b16 %v157
    %v315 = vunpack.c.h.b16 %v157
    %v316 = vunpack.c.l.b16 %v158
    %v317 = vunpack.c.h.b16 %v158
    %v318 = vunpack.c.l.b16 %v159
    %v319 = vunpack.c.h.b16 %v159
    %v320 = vunpack.c.l.b16 %v160
    %v321 = vunpack.c.h.b16 %v160
    %v322 = vunpack.c.l.b16 %v161
    %v323 = vunpack.c.h.b16 %v161
    %v324 = vunpack.c.l.b16 %v162
    %v325 = vunpack.c.h.b16 %v162
    %v326 = vunpack.c.l.b16 %v163
    %v327 = vunpack.c.h.b16 %v163
    %v328 = vunpack.c.l.b16 %v164
    %v329 = vunpack.c.h.b16 %v164
    %v330 = vunpack.c.l.b16 %v165
    %v331 = vunpack.c.h.b16 %v165
    %v332 = vunpack.c.l.b16 %v166
    %v333 = vunpack.c.h.b16 %v166
    %v334 = vunpack.c.l.b16 %v167
    %v335 = vunpack.c.h.b16 %v167
    %v336 = vunpack.c.l.b16 %v168
    %v337 = vunpack.c.h.b16 %v168
    %v338 = vunpack.c.l.b16 %v169
    %v339 = vunpack.c.h.b16 %v169
    %v340 = vunpack.c.l.b16 %v170
    %v341 = vunpack.c.h.b16 %v170
    %v342 = vunpack.c.l.b16 %v171
    %v343 = vunpack.c.h.b16 %v171
    %v344 = vunpack.c.l.b16 %v172
    %v345 = vunpack.c.h.b16 %v172
    %v346 = vunpack.c.l.b16 %v173
    %v347 = vunpack.c.h.b16 %v173
    %v348 = vunpack.c.l.b16 %v174
    %v349 = vunpack.c.h.b16 %v174
    %v350 = vunpack.c.l.b16 %v175
    %v351 = vunpack.c.h.b16 %v175
    %v352 = vunpack.c.l.b16 %v176
    %v353 = vunpack.c.h.b16 %v176
    %v354 = vunpack.c.l.b16 %v177
    %v355 = vunpack.c.h.b16 %v177
    %v356 = vunpack.c.l.b16 %v178
    %v357 = vunpack.c.h.b16 %v178
    %v358 = vunpack.c.l.b16 %v179
    %v359 = vunpack.c.h.b16 %v179
    %v360 = vunpack.c.l.b16 %v180
    %v361 = vunpack.c.h.b16 %v180
    %v362 = vunpack.c.l.b16 %v181
    %v363 = vunpack.c.h.b16 %v181
    %v364 = vunpack.c.l.b16 %v182
    %v365 = vunpack.c.h.b16 %v182
    %v366 = vunpack.c.l.b16 %v183
    %v367 = vunpack.c.h.b16 %v183
    %v368 = vunpack.c.l.b16 %v184
    %v369 = vunpack.c.h.b16 %v184
    %v370 = vunpack.c.l.b16 %v185
    %v371 = vunpack.c.h.b16 %v185
    %v372 = vunpack.c.l.b16 %v186
    %v373 = vunpack.c.h.b16 %v186
    %v374 = vunpack.c.l.b16 %v187
    %v375 = vunpack.c.h.b16 %v187
    %v376 = vunpack.c.l.b16 %v188
    %v377 = vunpack.c.h.b16 %v188
    %v378 = vpack.c.b16 %v262, %v260
    %v379 = vpack.c.b16 %v263, %v261
    %v380 = vpack.c.b16 %v266, %v264
    %v381 = vpack.c.b16 %v267, %v265
    %v382 = vpack.c.b16 %v270, %v268
    %v383 = vpack.c.b16 %v271, %v269
    %v384 = vpack.c.b16 %v274, %v272
    %v385 = vpack.c.b16 %v275, %v273
    %v386 = vpack.c.b16 %v278, %v276
    %v387 = vpack.c.b16 %v279, %v277
    %v388 = vpack.c.b16 %v282, %v280
    %v389 = vpack.c.b16 %v283, %v281
    %v390 = vpack.c.b16 %v286, %v284
    %v391 = vpack.c.b16 %v287, %v285
    %v392 = vpack.c.b16 %v290, %v288
    %v393 = vpack.c.b16 %v291, %v289
    %v394 = vpack.c.b16 %v294, %v292
    %v395 = vpack.c.b16 %v295, %v293
    %v396 = vpack.c.b16 %v298, %v296
    %v397 = vpack.c.b16 %v299, %v297
    %v398 = vpack.c.b16 %v302, %v300
    %v399 = vpack.c.b16 %v303, %v301
    %v400 = vpack.c.b16 %v306, %v304
    %v401 = vpack.c.b16 %v307, %v305
    %v402 = vpack.c.b16 %v310, %v308
    %v403 = vpack.c.b16 %v311, %v309
    %v404 = vpack.c.b16 %v314, %v312
    %v405 = vpack.c.b16 %v315, %v313
    %v406 = vpack.c.b16 %v318, %v316
    %v407 = vpack.c.b16 %v319, %v317
    %v408 = vpack.c.b16 %v322, %v320
    %v409 = vpack.c.b16 %v323, %v321
    %v410 = vpack.c.b16 %v326, %v324
    %v411 = vpack.c.b16 %v327, %v325
    %v412 = vpack.c.b16 %v330, %v328
    %v413 = vpack.c.b16 %v331, %v329
    %v414 = vpack.c.b16 %v334, %v332
    %v415 = vpack.c.b16 %v335, %v333
    %v416 = vpack.c.b16 %v338, %v336
    %v417 = vpack.c.b16 %v339, %v337
    %v418 = vpack.c.b16 %v342, %v340
    %v419 = vpack.c.b16 %v343, %v341
    %v420 = vpack.c.b16 %v346, %v344
    %v421 = vpack.c.b16 %v347, %v345
    %v422 = vpack.c.b16 %v350, %v348
    %v423 = vpack.c.b16 %v351, %v349
    %v424 = vpack.c.b16 %v354, %v352
    %v425 = vpack.c.b16 %v355, %v353
    %v426 = vpack.c.b16 %v358, %v356
    %v427 = vpack.c.b16 %v359, %v357
    %v428 = vpack.c.b16 %v362, %v360
    %v429 = vpack.c.b16 %v363, %v361
    %v430 = vpack.c.b16 %v366, %v364
    %v431 = vpack.c.b16 %v367, %v365
    %v432 = vpack.c.b16 %v370, %v368
    %v433 = vpack.c.b16 %v371, %v369
    %v434 = vpack.c.b16 %v374, %v372
    %v435 = vpack.c.b16 %v375, %v373
    %v436 = vpack.c.b16 %v376, %v376
    %v437 = vpack.c.b16 %v377, %v377
    %vm496 = vcmask 703488
    %v498 = vsel %vm496, %v117, 0
    %v501 = vsel %vm496, %v121, 0
    %v504 = vsel %vm496, %v125, 0
    %v507 = vsel %vm496, %v129, 0
    %vm509 = vcmask 1042432
    %v511 = vsel %vm509, %v436, 0
    %v514 = vsel %vm509, %v437, 0
    %516 = vmatprep.subr.bf16.mxu0 %v379
    %517 = vmatpush1.bf16.msra.mxu0 %v378
    %518 = vmatprep.subr.bf16.mxu0 %v381
    %519 = vmatpush1.bf16.msra.mxu0 %v380
    %520 = vmatprep.subr.bf16.mxu0 %v383
    %521 = vmatpush1.bf16.msra.mxu0 %v382
    %522 = vmatprep.subr.bf16.mxu0 %v385
    %523 = vmatpush1.bf16.msra.mxu0 %v384
    %524 = vmatprep.subr.bf16.mxu0 %v387
    %525 = vmatpush1.bf16.msra.mxu0 %v386
    %526 = vmatprep.subr.bf16.mxu0 %v389
    %527 = vmatpush1.bf16.msra.mxu0 %v388
    %528 = vmatprep.subr.bf16.mxu0 %v391
    %529 = vmatpush1.bf16.msra.mxu0 %v390
    %530 = vmatprep.subr.bf16.mxu0 %v393
    %531 = vmatpush1.bf16.msra.mxu0 %v392
    %532 = vmatprep.subr.bf16.mxu0 %v395
    %533 = vmatpush1.bf16.msra.mxu0 %v394
    %534 = vmatprep.subr.bf16.mxu0 %v397
    %535 = vmatpush1.bf16.msra.mxu0 %v396
    %536 = vmatprep.subr.bf16.mxu0 %v399
    %537 = vmatpush1.bf16.msra.mxu0 %v398
    %538 = vmatprep.subr.bf16.mxu0 %v401
    %539 = vmatpush1.bf16.msra.mxu0 %v400
    %540 = vmatprep.subr.bf16.mxu0 %v403
    %541 = vmatpush1.bf16.msra.mxu0 %v402
    %542 = vmatprep.subr.bf16.mxu0 %v405
    %543 = vmatpush1.bf16.msra.mxu0 %v404
    %544 = vmatprep.subr.bf16.mxu0 %v407
    %545 = vmatpush1.bf16.msra.mxu0 %v406
    %546 = vmatprep.subr.bf16.mxu0 %v409
    %547 = vmatpush1.bf16.msra.mxu0 %v408
    %548 = vmatprep.mubr.bf16.mxu0 %v115
    %549 = vmatmul.mubr.bf16.gmra.mrb[0].mxu0 %v114
    %v550 = vpop.f32.mrb[0].mxu0
    %v551 = vadd.f32 %v194, %v550
    %v552 = vpop.f32.mrb[0].mxu0
    %v553 = vadd.f32 %v198, %v552
    %v554 = vpop.f32.mrb[0].mxu0
    %v555 = vadd.f32 %v194, %v554
    %v556 = vpop.f32.mrb[0].mxu0
    %v557 = vadd.f32 %v198, %v556
    %558 = vmatprep.mubr.bf16.mxu0 %v119
    %559 = vmatmul.mubr.bf16.gmra.mrb[0].mxu0 %v118
    %v560 = vpop.f32.mrb[0].mxu0
    %v561 = vadd.f32 %v194, %v560
    %v562 = vpop.f32.mrb[0].mxu0
    %v563 = vadd.f32 %v198, %v562
    %v564 = vpop.f32.mrb[0].mxu0
    %v565 = vadd.f32 %v194, %v564
    %v566 = vpop.f32.mrb[0].mxu0
    %v567 = vadd.f32 %v198, %v566
    %568 = vmatprep.mubr.bf16.mxu0 %v123
    %569 = vmatmul.mubr.bf16.gmra.mrb[0].mxu0 %v122
    %v570 = vpop.f32.mrb[0].mxu0
    %v571 = vadd.f32 %v194, %v570
    %v572 = vpop.f32.mrb[0].mxu0
    %v573 = vadd.f32 %v198, %v572
    %v574 = vpop.f32.mrb[0].mxu0
    %v575 = vadd.f32 %v194, %v574
    %v576 = vpop.f32.mrb[0].mxu0
    %v577 = vadd.f32 %v198, %v576
    %578 = vmatprep.mubr.bf16.mxu0 %v127
    %579 = vmatmul.mubr.bf16.gmra.mrb[0].mxu0 %v126
    %v580 = vpop.f32.mrb[0].mxu0
    %v581 = vadd.f32 %v194, %v580
    %v582 = vpop.f32.mrb[0].mxu0
    %v583 = vadd.f32 %v198, %v582
    %v584 = vpop.f32.mrb[0].mxu0
    %v585 = vadd.f32 %v194, %v584
    %v586 = vpop.f32.mrb[0].mxu0
    %v587 = vadd.f32 %v198, %v586
    %588 = vdwg.mxu0
    %589 = vmatprep.subr.bf16.mxu0 %v411
    %590 = vmatpush1.bf16.msra.mxu0 %v410
    %591 = vmatprep.subr.bf16.mxu0 %v413
    %592 = vmatpush1.bf16.msra.mxu0 %v412
    %593 = vmatprep.subr.bf16.mxu0 %v415
    %594 = vmatpush1.bf16.msra.mxu0 %v414
    %595 = vmatprep.subr.bf16.mxu0 %v417
    %596 = vmatpush1.bf16.msra.mxu0 %v416
    %597 = vmatprep.subr.bf16.mxu0 %v419
    %598 = vmatpush1.bf16.msra.mxu0 %v418
    %599 = vmatprep.subr.bf16.mxu0 %v421
    %600 = vmatpush1.bf16.msra.mxu0 %v420
    %601 = vmatprep.subr.bf16.mxu0 %v423
    %602 = vmatpush1.bf16.msra.mxu0 %v422
    %603 = vmatprep.subr.bf16.mxu0 %v425
    %604 = vmatpush1.bf16.msra.mxu0 %v424
    %605 = vmatprep.subr.bf16.mxu0 %v427
    %606 = vmatpush1.bf16.msra.mxu0 %v426
    %607 = vmatprep.subr.bf16.mxu0 %v429
    %608 = vmatpush1.bf16.msra.mxu0 %v428
    %609 = vmatprep.subr.bf16.mxu0 %v431
    %610 = vmatpush1.bf16.msra.mxu0 %v430
    %611 = vmatprep.subr.bf16.mxu0 %v433
    %612 = vmatpush1.bf16.msra.mxu0 %v432
    %613 = vmatprep.subr.bf16.mxu0 %v435
    %614 = vmatpush1.bf16.msra.mxu0 %v434
    %615 = vmatprep.subr.bf16.mxu0 %v514
    %616 = vmatpush1.bf16.msra.mxu0 %v511
    %617 = vmatprep.subr.bf16.mxu0 0
    %618 = vmatpush1.bf16.msra.mxu0 0
    %619 = vmatprep.subr.bf16.mxu0 0
    %620 = vmatpush1.bf16.msra.mxu0 0
    %621 = vmatprep.mubr.bf16.mxu0 %v498
    %622 = vmatmul.mubr.bf16.gmra.mrb[0].mxu0 %v116
    %v623 = vpop.f32.mrb[0].mxu0
    %v624 = vadd.f32 %v551, %v623
    %v625 = vpop.f32.mrb[0].mxu0
    %v626 = vadd.f32 %v553, %v625
    %v627 = vpop.f32.mrb[0].mxu0
    %v628 = vadd.f32 %v555, %v627
    %v629 = vpop.f32.mrb[0].mxu0
    %v630 = vadd.f32 %v557, %v629
    %631 = vmatprep.mubr.bf16.mxu0 %v501
    %632 = vmatmul.mubr.bf16.gmra.mrb[0].mxu0 %v120
    %v633 = vpop.f32.mrb[0].mxu0
    %v634 = vadd.f32 %v561, %v633
    %v635 = vpop.f32.mrb[0].mxu0
    %v636 = vadd.f32 %v563, %v635
    %v637 = vpop.f32.mrb[0].mxu0
    %v638 = vadd.f32 %v565, %v637
    %v639 = vpop.f32.mrb[0].mxu0
    %v640 = vadd.f32 %v567, %v639
    %641 = vmatprep.mubr.bf16.mxu0 %v504
    %642 = vmatmul.mubr.bf16.gmra.mrb[0].mxu0 %v124
    %v643 = vpop.f32.mrb[0].mxu0
    %v644 = vadd.f32 %v571, %v643
    %v645 = vpop.f32.mrb[0].mxu0
    %v646 = vadd.f32 %v573, %v645
    %v647 = vpop.f32.mrb[0].mxu0
    %v648 = vadd.f32 %v575, %v647
    %v649 = vpop.f32.mrb[0].mxu0
    %v650 = vadd.f32 %v577, %v649
    %651 = vmatprep.mubr.bf16.mxu0 %v507
    %652 = vmatmul.mubr.bf16.gmra.mrb[0].mxu0 %v128
    %v653 = vpop.f32.mrb[0].mxu0
    %v654 = vadd.f32 %v581, %v653
    %v655 = vpop.f32.mrb[0].mxu0
    %v656 = vadd.f32 %v583, %v655
    %v657 = vpop.f32.mrb[0].mxu0
    %v658 = vadd.f32 %v585, %v657
    %v659 = vpop.f32.mrb[0].mxu0
    %v660 = vadd.f32 %v587, %v659
    %661 = vdwg.mxu0
    %v662 = vmax.f32 %v624, 0.0
    %v663 = vmax.f32 %v626, 0.0
    %v664 = vmax.f32 %v628, 0.0
    %v665 = vmax.f32 %v630, 0.0
    %v666 = vmax.f32 %v634, 0.0
    %v667 = vmax.f32 %v636, 0.0
    %v668 = vmax.f32 %v638, 0.0
    %v669 = vmax.f32 %v640, 0.0
    %v670 = vmax.f32 %v644, 0.0
    %v671 = vmax.f32 %v646, 0.0
    %v672 = vmax.f32 %v648, 0.0
    %v673 = vmax.f32 %v650, 0.0
    %v674 = vmax.f32 %v654, 0.0
    %v675 = vmax.f32 %v656, 0.0
    %v676 = vmax.f32 %v658, 0.0
    %v677 = vmax.f32 %v660, 0.0
    %v678 = vpack.c.bf16 %v664, %v662
    %v679 = vpack.c.bf16 %v665, %v663
    %v680 = vpack.c.bf16 %v668, %v666
    %v681 = vpack.c.bf16 %v669, %v667
    %v682 = vpack.c.bf16 %v672, %v670
    %v683 = vpack.c.bf16 %v673, %v671
    %v684 = vpack.c.bf16 %v676, %v674
    %v685 = vpack.c.bf16 %v677, %v675
    %v686 = vld [vmem:[#allocation6] sm:$0xf]
    %v687 = vld [vmem:[#allocation6 + $0x4] sm:$0xf]
    %v688 = vld [vmem:[#allocation6 + $0x8] sm:$0xf]
    %v689 = vld [vmem:[#allocation6 + $0xc] sm:$0xf]
    %v690 = vld [vmem:[#allocation6 + $0x10] sm:$0xf]
    %v691 = vld [vmem:[#allocation6 + $0x14] sm:$0xf]
    %v692 = vld [vmem:[#allocation6 + $0x18] sm:$0xf]
    %v693 = vld [vmem:[#allocation6 + $0x1c] sm:$0xf]
    %v694 = vld [vmem:[#allocation6 + $0x20] sm:$0xf]
    %v695 = vld [vmem:[#allocation6 + $0x24] sm:$0xf]
    %v696 = vld [vmem:[#allocation6 + $0x28] sm:$0xf]
    %v697 = vld [vmem:[#allocation6 + $0x2c] sm:$0xf]
    %v698 = vld [vmem:[#allocation6 + $0x30] sm:$0xf]
    %v699 = vld [vmem:[#allocation6 + $0x34] sm:$0xf]
    %v700 = vld [vmem:[#allocation6 + $0x38] sm:$0xf]
    %v701 = vld [vmem:[#allocation6 + $0x3c] sm:$0xf]
    %v702 = vld [vmem:[#allocation6 + $0x40] sm:$0xf]
    %v703 = vld [vmem:[#allocation6 + $0x44] sm:$0xf]
    %v704 = vld [vmem:[#allocation6 + $0x48] sm:$0xf]
    %v705 = vld [vmem:[#allocation6 + $0x4c] sm:$0xf]
    %v706 = vld [vmem:[#allocation6 + $0x50] sm:$0xf]
    %v707 = vld [vmem:[#allocation6 + $0x54] sm:$0xf]
    %v708 = vld [vmem:[#allocation6 + $0x58] sm:$0xf]
    %v709 = vld [vmem:[#allocation6 + $0x5c] sm:$0xf]
    %v710 = vld [vmem:[#allocation6 + $0x60] sm:$0xf]
    %v711 = vld [vmem:[#allocation6 + $0x64] sm:$0xf]
    %v712 = vld [vmem:[#allocation6 + $0x68] sm:$0xf]
    %v713 = vld [vmem:[#allocation6 + $0x6c] sm:$0xf]
    %v714 = vld [vmem:[#allocation6 + $0x70] sm:$0xf]
    %v715 = vld [vmem:[#allocation6 + $0x74] sm:$0xf]
    %v716 = vld [vmem:[#allocation6 + $0x78] sm:$0xf]
    %v717 = vld [vmem:[#allocation6 + $0x7c] sm:$0xf]
    %v718 = vld [vmem:[%s4] sm:$0x1]
    %v720 = vlaneseq
    %v721 = vshrl.u32 %v720, 7
    %v722 = vsub.s32 0, %v721
    %v723 = vrot.slane %v718, %v722
    %v757 = vunpack.c.l.b16 %v686
    %v758 = vunpack.c.l.b16 %v687
    %v759 = vunpack.c.l.b16 %v688
    %v760 = vunpack.c.l.b16 %v689
    %v761 = vunpack.c.l.b16 %v690
    %v762 = vunpack.c.l.b16 %v691
    %v763 = vunpack.c.l.b16 %v692
    %v764 = vunpack.c.l.b16 %v693
    %v765 = vunpack.c.l.b16 %v694
    %v766 = vunpack.c.l.b16 %v695
    %v767 = vunpack.c.l.b16 %v696
    %v768 = vunpack.c.l.b16 %v697
    %v769 = vunpack.c.l.b16 %v698
    %v770 = vunpack.c.l.b16 %v699
    %v771 = vunpack.c.l.b16 %v700
    %v772 = vunpack.c.l.b16 %v701
    %v773 = vunpack.c.l.b16 %v702
    %v774 = vunpack.c.l.b16 %v703
    %v775 = vunpack.c.l.b16 %v704
    %v776 = vunpack.c.l.b16 %v705
    %v777 = vunpack.c.l.b16 %v706
    %v778 = vunpack.c.l.b16 %v707
    %v779 = vunpack.c.l.b16 %v708
    %v780 = vunpack.c.l.b16 %v709
    %v781 = vunpack.c.l.b16 %v710
    %v782 = vunpack.c.l.b16 %v711
    %v783 = vunpack.c.l.b16 %v712
    %v784 = vunpack.c.l.b16 %v713
    %v785 = vunpack.c.l.b16 %v714
    %v786 = vunpack.c.l.b16 %v715
    %v787 = vunpack.c.l.b16 %v716
    %v788 = vunpack.c.l.b16 %v717
    %v789 = vpack.c.b16 %v758, %v757
    %v790 = vpack.c.b16 %v760, %v759
    %v791 = vpack.c.b16 %v762, %v761
    %v792 = vpack.c.b16 %v764, %v763
    %v793 = vpack.c.b16 %v766, %v765
    %v794 = vpack.c.b16 %v768, %v767
    %v795 = vpack.c.b16 %v770, %v769
    %v796 = vpack.c.b16 %v772, %v771
    %v797 = vpack.c.b16 %v774, %v773
    %v798 = vpack.c.b16 %v776, %v775
    %v799 = vpack.c.b16 %v778, %v777
    %v800 = vpack.c.b16 %v780, %v779
    %v801 = vpack.c.b16 %v782, %v781
    %v802 = vpack.c.b16 %v784, %v783
    %v803 = vpack.c.b16 %v786, %v785
    %v804 = vpack.c.b16 %v788, %v787
    %821 = vmatprep.subr.bf16.mxu0 0
    %822 = vmatpush1.bf16.msra.mxu0 %v789
    %823 = vmatprep.subr.bf16.mxu0 0
    %824 = vmatpush1.bf16.msra.mxu0 %v790
    %825 = vmatprep.subr.bf16.mxu0 0
    %826 = vmatpush1.bf16.msra.mxu0 %v791
    %827 = vmatprep.subr.bf16.mxu0 0
    %828 = vmatpush1.bf16.msra.mxu0 %v792
    %829 = vmatprep.subr.bf16.mxu0 0
    %830 = vmatpush1.bf16.msra.mxu0 %v793
    %831 = vmatprep.subr.bf16.mxu0 0
    %832 = vmatpush1.bf16.msra.mxu0 %v794
    %833 = vmatprep.subr.bf16.mxu0 0
    %834 = vmatpush1.bf16.msra.mxu0 %v795
    %835 = vmatprep.subr.bf16.mxu0 0
    %836 = vmatpush1.bf16.msra.mxu0 %v796
    %837 = vmatprep.subr.bf16.mxu0 0
    %838 = vmatpush1.bf16.msra.mxu0 %v797
    %839 = vmatprep.subr.bf16.mxu0 0
    %840 = vmatpush1.bf16.msra.mxu0 %v798
    %841 = vmatprep.subr.bf16.mxu0 0
    %842 = vmatpush1.bf16.msra.mxu0 %v799
    %843 = vmatprep.subr.bf16.mxu0 0
    %844 = vmatpush1.bf16.msra.mxu0 %v800
    %845 = vmatprep.subr.bf16.mxu0 0
    %846 = vmatpush1.bf16.msra.mxu0 %v801
    %847 = vmatprep.subr.bf16.mxu0 0
    %848 = vmatpush1.bf16.msra.mxu0 %v802
    %849 = vmatprep.subr.bf16.mxu0 0
    %850 = vmatpush1.bf16.msra.mxu0 %v803
    %851 = vmatprep.subr.bf16.mxu0 0
    %852 = vmatpush1.bf16.msra.mxu0 %v804
    %853 = vmatprep.mubr.bf16.mxu0 %v679
    %854 = vmatmul.mubr.bf16.gmra.mrb[0].mxu0 %v678
    %v855 = vpop.f32.mrb[0].mxu0
    %v856 = vadd.f32 %v723, %v855
    %v857 = vpop.f32.mrb[0].mxu0
    %v858 = vpop.f32.mrb[0].mxu0
    %v859 = vadd.f32 %v723, %v858
    %v860 = vpop.f32.mrb[0].mxu0
    %861 = vmatprep.mubr.bf16.mxu0 %v681
    %862 = vmatmul.mubr.bf16.gmra.mrb[0].mxu0 %v680
    %v863 = vpop.f32.mrb[0].mxu0
    %v864 = vadd.f32 %v723, %v863
    %v865 = vpop.f32.mrb[0].mxu0
    %v866 = vpop.f32.mrb[0].mxu0
    %v867 = vadd.f32 %v723, %v866
    %v868 = vpop.f32.mrb[0].mxu0
    %869 = vmatprep.mubr.bf16.mxu0 %v683
    %870 = vmatmul.mubr.bf16.gmra.mrb[0].mxu0 %v682
    %v871 = vpop.f32.mrb[0].mxu0
    %v872 = vadd.f32 %v723, %v871
    %v873 = vpop.f32.mrb[0].mxu0
    %v874 = vpop.f32.mrb[0].mxu0
    %v875 = vadd.f32 %v723, %v874
    %v876 = vpop.f32.mrb[0].mxu0
    %877 = vmatprep.mubr.bf16.mxu0 %v685
    %878 = vmatmul.mubr.bf16.gmra.mrb[0].mxu0 %v684
    %v879 = vpop.f32.mrb[0].mxu0
    %v880 = vadd.f32 %v723, %v879
    %v881 = vpop.f32.mrb[0].mxu0
    %v882 = vpop.f32.mrb[0].mxu0
    %v883 = vadd.f32 %v723, %v882
    %v884 = vpop.f32.mrb[0].mxu0
    %885 = vdwg.mxu0
    %v886 = vmax.f32 %v856, 0.0
    %v887 = vmax.f32 %v859, 0.0
    %v888 = vmax.f32 %v864, 0.0
    %v889 = vmax.f32 %v867, 0.0
    %v890 = vmax.f32 %v872, 0.0
    %v891 = vmax.f32 %v875, 0.0
    %v892 = vmax.f32 %v880, 0.0
    %v893 = vmax.f32 %v883, 0.0
    %v894 = vpack.c.bf16 %v887, %v886
    %v895 = vpack.c.bf16 %v889, %v888
    %v896 = vpack.c.bf16 %v891, %v890
    %v897 = vpack.c.bf16 %v893, %v892
    %v898 = vld [vmem:[#allocation7] sm:$0xf]
    %v899 = vld [vmem:[#allocation7 + $0x4] sm:$0xf]
    %v900 = vld [vmem:[#allocation7 + $0x8] sm:$0xf]
    %v901 = vld [vmem:[#allocation7 + $0xc] sm:$0xf]
    %v902 = vld [vmem:[#allocation7 + $0x10] sm:$0xf]
    %v903 = vld [vmem:[#allocation7 + $0x14] sm:$0xf]
    %v904 = vld [vmem:[#allocation7 + $0x18] sm:$0xf]
    %v905 = vld [vmem:[#allocation7 + $0x1c] sm:$0xf]
    %v906 = vld [vmem:[#allocation7 + $0x20] sm:$0xf]
    %v907 = vld [vmem:[#allocation7 + $0x24] sm:$0xf]
    %v908 = vld [vmem:[#allocation7 + $0x28] sm:$0xf]
    %v909 = vld [vmem:[#allocation7 + $0x2c] sm:$0xf]
    %v910 = vld [vmem:[#allocation7 + $0x30] sm:$0xf]
    %v911 = vld [vmem:[#allocation7 + $0x34] sm:$0xf]
    %v912 = vld [vmem:[#allocation7 + $0x38] sm:$0xf]
    %v913 = vld [vmem:[#allocation7 + $0x3c] sm:$0xf]
    %v914 = vld [vmem:[%s6] sm:$0x1]
    %v916 = vlaneseq
    %v917 = vshrl.u32 %v916, 7
    %v918 = vsub.s32 0, %v917
    %v919 = vrot.slane %v914, %v918
    %v937 = vunpack.c.l.b16 %v898
    %v938 = vunpack.c.l.b16 %v899
    %v939 = vunpack.c.l.b16 %v900
    %v940 = vunpack.c.l.b16 %v901
    %v941 = vunpack.c.l.b16 %v902
    %v942 = vunpack.c.l.b16 %v903
    %v943 = vunpack.c.l.b16 %v904
    %v944 = vunpack.c.l.b16 %v905
    %v945 = vunpack.c.l.b16 %v906
    %v946 = vunpack.c.l.b16 %v907
    %v947 = vunpack.c.l.b16 %v908
    %v948 = vunpack.c.l.b16 %v909
    %v949 = vunpack.c.l.b16 %v910
    %v950 = vunpack.c.l.b16 %v911
    %v951 = vunpack.c.l.b16 %v912
    %v952 = vunpack.c.l.b16 %v913
    %v953 = vpack.c.b16 %v938, %v937
    %v954 = vpack.c.b16 %v940, %v939
    %v955 = vpack.c.b16 %v942, %v941
    %v956 = vpack.c.b16 %v944, %v943
    %v957 = vpack.c.b16 %v946, %v945
    %v958 = vpack.c.b16 %v948, %v947
    %v959 = vpack.c.b16 %v950, %v949
    %v960 = vpack.c.b16 %v952, %v951
    %969 = vmatprep.subr.bf16.mxu0 0
    %970 = vmatpush1.bf16.msra.mxu0 %v953
    %971 = vmatprep.subr.bf16.mxu0 0
    %972 = vmatpush1.bf16.msra.mxu0 %v954
    %973 = vmatprep.subr.bf16.mxu0 0
    %974 = vmatpush1.bf16.msra.mxu0 %v955
    %975 = vmatprep.subr.bf16.mxu0 0
    %976 = vmatpush1.bf16.msra.mxu0 %v956
    %977 = vmatprep.subr.bf16.mxu0 0
    %978 = vmatpush1.bf16.msra.mxu0 %v957
    %979 = vmatprep.subr.bf16.mxu0 0
    %980 = vmatpush1.bf16.msra.mxu0 %v958
    %981 = vmatprep.subr.bf16.mxu0 0
    %982 = vmatpush1.bf16.msra.mxu0 %v959
    %983 = vmatprep.subr.bf16.mxu0 0
    %984 = vmatpush1.bf16.msra.mxu0 %v960
    %985 = vmatprep.subr.bf16.mxu0 0
    %986 = vmatpush1.bf16.msra.mxu0 0
    %987 = vmatprep.subr.bf16.mxu0 0
    %988 = vmatpush1.bf16.msra.mxu0 0
    %989 = vmatprep.subr.bf16.mxu0 0
    %990 = vmatpush1.bf16.msra.mxu0 0
    %991 = vmatprep.subr.bf16.mxu0 0
    %992 = vmatpush1.bf16.msra.mxu0 0
    %993 = vmatprep.subr.bf16.mxu0 0
    %994 = vmatpush1.bf16.msra.mxu0 0
    %995 = vmatprep.subr.bf16.mxu0 0
    %996 = vmatpush1.bf16.msra.mxu0 0
    %997 = vmatprep.subr.bf16.mxu0 0
    %998 = vmatpush1.bf16.msra.mxu0 0
    %999 = vmatprep.subr.bf16.mxu0 0
    %1000 = vmatpush1.bf16.msra.mxu0 0
    %1001 = vmatprep.mubr.bf16.mxu0 0
    %1002 = vmatmul.mubr.bf16.gmra.mrb[0].mxu0 %v894
    %v1003 = vpop.f32.mrb[0].mxu0
    %v1004 = vadd.f32 %v919, %v1003
    %v1005 = vpop.f32.mrb[0].mxu0
    %v1006 = vpop.f32.mrb[0].mxu0
    %v1007 = vadd.f32 %v919, %v1006
    %v1008 = vpop.f32.mrb[0].mxu0
    %1009 = vmatprep.mubr.bf16.mxu0 0
    %1010 = vmatmul.mubr.bf16.gmra.mrb[0].mxu0 %v895
    %v1011 = vpop.f32.mrb[0].mxu0
    %v1012 = vadd.f32 %v919, %v1011
    %v1013 = vpop.f32.mrb[0].mxu0
    %v1014 = vpop.f32.mrb[0].mxu0
    %v1015 = vadd.f32 %v919, %v1014
    %v1016 = vpop.f32.mrb[0].mxu0
    %1017 = vmatprep.mubr.bf16.mxu0 0
    %1018 = vmatmul.mubr.bf16.gmra.mrb[0].mxu0 %v896
    %v1019 = vpop.f32.mrb[0].mxu0
    %v1020 = vadd.f32 %v919, %v1019
    %v1021 = vpop.f32.mrb[0].mxu0
    %v1022 = vpop.f32.mrb[0].mxu0
    %v1023 = vadd.f32 %v919, %v1022
    %v1024 = vpop.f32.mrb[0].mxu0
    %1025 = vmatprep.mubr.bf16.mxu0 0
    %1026 = vmatmul.mubr.bf16.gmra.mrb[0].mxu0 %v897
    %v1027 = vpop.f32.mrb[0].mxu0
    %v1028 = vadd.f32 %v919, %v1027
    %v1029 = vpop.f32.mrb[0].mxu0
    %v1030 = vpop.f32.mrb[0].mxu0
    %v1031 = vadd.f32 %v919, %v1030
    %v1032 = vpop.f32.mrb[0].mxu0
    %1033 = vdwg.mxu0
    %1034 = vst [vmem:[%s7] sm:$0xff] %v1004
    %1035 = vst [vmem:[%s7 + $0x8] sm:$0xff] %v1007
    %1036 = vst [vmem:[%s7 + $0x10] sm:$0xff] %v1012
    %1037 = vst [vmem:[%s7 + $0x18] sm:$0xff] %v1015
    %1038 = vst [vmem:[%s7 + $0x20] sm:$0xff] %v1020
    %1039 = vst [vmem:[%s7 + $0x28] sm:$0xff] %v1023
    %1040 = vst [vmem:[%s7 + $0x30] sm:$0xff] %v1028
    %1041 = vst [vmem:[%s7 + $0x38] sm:$0xff] %v1031
    // Predicated region
    $region46: #{_lambda_.1} parent=1 // pred_check
      _
    $region47: #{_lambda_.1} parent=1 // pred_check_branch
      %1043 = sbr.rel (0) target = $region49
    $region48: #{_lambda_.1} parent=1 // pred_region
      _
    $region49: #{_lambda_.1} parent=1 // pred_fallthru
      _
    // Predicated region
    $region50: #{_lambda_.1} parent=1 // pred_check
      _
    $region51: #{_lambda_.1} parent=1 // pred_check_branch
      %1045 = sbr.rel (0) target = $region53
    $region52: #{_lambda_.1} parent=1 // pred_region
      _
    $region53: #{_lambda_.1} parent=1 // pred_fallthru
      _
    %1046 = vsyncpa [#allocation3], 1
    %1047 = vsyncpa [#allocation5], 1
    %1048 = vsyncpa [#allocation8], 1

</llo_original>
